<compile_context>
chip_gen: v6e
topology: v6e:2x2x1
jax: 0.10.0
libtpu: 0.0.40
codegen_flags: <defaults>
</compile_context>

<pallas_src>
import functools

import jax
import jax.numpy as jnp
from jax.experimental import pallas as pl
from jax.experimental.pallas import tpu as pltpu

_LANE = 128


def _gate_from_mean(mean_f32, w1t, w2):
    """mean_f32: (C,1) f32; w1t: (C,Csq); w2: (C,Csq) -> sigmoid gate (C,1) f32."""
    # squeeze: h[j] = sum_c W1[j, c] * mean[c]          -> (1, Csq)
    h = jnp.sum(w1t.astype(jnp.float32) * mean_f32, axis=0, keepdims=True)
    # excite:  z[c] = sum_j W2[c, j] * h[j]             -> (C, 1)
    z = jnp.sum(w2.astype(jnp.float32) * h, axis=1, keepdims=True)
    return jax.nn.sigmoid(z)


# --------------------------------------------------------------------------
# Fused single-pass kernel: whole (C, HW) slab of one batch element resident.
# --------------------------------------------------------------------------
def _cse_fused_kernel(x_ref, w1t_ref, w2_ref, o_ref, *, inv_hw):
    # x_ref/o_ref: (1, C, HW); w1t_ref/w2_ref: (C, Csq)
    x = x_ref[0]                                                   # (C, HW)
    s = jnp.sum(x, axis=-1, keepdims=True, dtype=jnp.float32)      # (C, 1)
    g = _gate_from_mean(s * inv_hw, w1t_ref[...], w2_ref[...])     # (C, 1) f32
    # multiply in the native dtype (gate in [0,1]; f32 upcast not needed)
    o_ref[0] = x * g.astype(x.dtype)


# --------------------------------------------------------------------------
# Fallback pass 1: streaming global-average-pool + squeeze/excite -> gate.
# --------------------------------------------------------------------------
def _pool_gate_kernel(x_ref, w1t_ref, w2_ref, g_ref, acc_ref, *, inv_hw, hw, tile):
    # x_ref: (1, C, T); g_ref: (1, C, 1) (resident over t); acc_ref: (C, 128) f32
    t = pl.program_id(1)

    @pl.when(t == 0)
    def _init():
        acc_ref[...] = jnp.zeros_like(acc_ref)

    x = x_ref[0].astype(jnp.float32)                               # (C, T)
    # Mask the ragged tail (only the last, partial block has masked lanes).
    pos = t * tile + jax.lax.broadcasted_iota(jnp.int32, x.shape, 1)
    x = jnp.where(pos < hw, x, 0.0)

    # (C, 128) accumulator: per-step work is lane-aligned VPU adds only; the
    # single cross-lane reduce happens once, in the finalize phase.
    acc = acc_ref[...]
    for i in range(tile // _LANE):
        acc = acc + x[:, i * _LANE:(i + 1) * _LANE]
    acc_ref[...] = acc

    @pl.when(t == pl.num_programs(1) - 1)
    def _finalize():
        mean = jnp.sum(acc_ref[...], axis=-1, keepdims=True) * inv_hw  # (C, 1)
        g = _gate_from_mean(mean, w1t_ref[...], w2_ref[...])
        g_ref[0] = g.astype(g_ref.dtype)


# --------------------------------------------------------------------------
# Fallback pass 2: out = x * gate (per-channel scalar).
# --------------------------------------------------------------------------
def _scale_kernel(g_ref, x_ref, o_ref):
    # g_ref: (1, C, 1); x_ref / o_ref: (1, C, T)
    g = g_ref[0].astype(x_ref.dtype)                               # (C, 1)
    o_ref[0] = x_ref[0] * g


def cse_pallas(U, w1, w2, *,
               target_block_bytes=4 * 1024 * 1024,
               fused_slab_limit_bytes=10 * 1024 * 1024,
               vmem_limit_bytes=48 * 1024 * 1024):
    """U: (N, C, H, W).
    w1: (Csq, C)  -- Conv_Squeeze weight (squeezed from (Csq, C, 1, 1))
    w2: (C, Csq)  -- Conv_Excitation weight (squeezed from (C, Csq, 1, 1))
    Returns (N, C, H, W)."""
    N, C, H, W = U.shape
    HW = H * W
    Csq = w1.shape[0]
    dtype = U.dtype
    itemsize = jnp.dtype(dtype).itemsize

    # Free reshape: channels on sublanes, spatial on lanes (lane-dense).
    x = U.reshape(N, C, HW)
    w1t = jnp.transpose(w1)  # (C, Csq) -- tiny
    inv_hw = float(1.0 / HW)

    # Account the slab at >= f32 width (the pooling sum accumulates in f32).
    slab_bytes = C * HW * max(itemsize, 4)

    if slab_bytes <= fused_slab_limit_bytes:
        # ---- fused single pass: read x once + write out once ---------------
        # TODO(synk): for N=1 on v7x, split HW across the two TensorCores
        # (leading core axis + per-core partial gate combine) to use both TCs.
        out = pl.pallas_call(
            functools.partial(_cse_fused_kernel, inv_hw=inv_hw),
            out_shape=jax.ShapeDtypeStruct((N, C, HW), dtype),
            grid_spec=pltpu.PrefetchScalarGridSpec(
                num_scalar_prefetch=0,
                grid=(N,),
                in_specs=[
                    pl.BlockSpec((1, C, HW), lambda n: (n, 0, 0)),
                    pl.BlockSpec((C, Csq), lambda n: (0, 0)),
                    pl.BlockSpec((C, Csq), lambda n: (0, 0)),
                ],
                out_specs=pl.BlockSpec((1, C, HW), lambda n: (n, 0, 0)),
            ),
            compiler_params=pltpu.CompilerParams(
                dimension_semantics=("parallel",),
                vmem_limit_bytes=vmem_limit_bytes),
        )(x, w1t, w2)
        return out.reshape(N, C, H, W)

    # ---- fallback: two streaming passes, ragged HW handled in-kernel -------
    # Pick T directly (multiple of 128, ~target_block_bytes); partial last block.
    max_lanes = max(_LANE,
                    (target_block_bytes // max(1, C * itemsize)) // _LANE * _LANE)
    hw_lanes = pl.cdiv(HW, _LANE) * _LANE
    T = int(min(max_lanes, hw_lanes))
    n_t = pl.cdiv(HW, T)

    # pass 1: global average pool + squeeze/excite + sigmoid -> gate (N, C, 1)
    gate = pl.pallas_call(
        functools.partial(_pool_gate_kernel, inv_hw=inv_hw, hw=HW, tile=T),
        out_shape=jax.ShapeDtypeStruct((N, C, 1), jnp.float32),
        grid_spec=pltpu.PrefetchScalarGridSpec(
            num_scalar_prefetch=0,
            grid=(N, n_t),
            in_specs=[
                pl.BlockSpec((1, C, T), lambda n, t: (n, 0, t)),
                pl.BlockSpec((C, Csq), lambda n, t: (0, 0)),
                pl.BlockSpec((C, Csq), lambda n, t: (0, 0)),
            ],
            out_specs=pl.BlockSpec((1, C, 1), lambda n, t: (n, 0, 0)),
            scratch_shapes=[pltpu.VMEM((C, _LANE), jnp.float32)],
        ),
        compiler_params=pltpu.CompilerParams(
            dimension_semantics=("parallel", "arbitrary"),
            vmem_limit_bytes=vmem_limit_bytes),
    )(x, w1t, w2)

    # pass 2: scale every spatial location by its channel gate
    out = pl.pallas_call(
        _scale_kernel,
        out_shape=jax.ShapeDtypeStruct((N, C, HW), dtype),
        grid_spec=pltpu.PrefetchScalarGridSpec(
            num_scalar_prefetch=0,
            grid=(N, n_t),
            in_specs=[
                pl.BlockSpec((1, C, 1), lambda n, t: (n, 0, 0)),
                pl.BlockSpec((1, C, T), lambda n, t: (n, 0, t)),
            ],
            out_specs=pl.BlockSpec((1, C, T), lambda n, t: (n, 0, t)),
        ),
        compiler_params=pltpu.CompilerParams(
            dimension_semantics=("parallel", "parallel"),
            vmem_limit_bytes=vmem_limit_bytes),
    )(gate, x)

    return out.reshape(N, C, H, W)


def cse_reference(U, w1, w2):
    # pure-JAX reference of the PyTorch forward
    z = jnp.mean(U, axis=(2, 3), keepdims=True)              # (N, C, 1, 1)
    z = jnp.einsum('nchw,oc->nohw', z, w1)                    # (N, Csq, 1, 1)
    z = jnp.einsum('nchw,oc->nohw', z, w2)                    # (N, C, 1, 1)
    z = jax.nn.sigmoid(z)
    return U * z


if __name__ == "__main__":
    key = jax.random.PRNGKey(0)
    k_x, k_w1, k_w2, k_x2 = jax.random.split(key, 4)

    # Case 1: small feature map -> fused single-pass path.
    N, C, H, W = 2, 4, 16, 16
    squeeze_rate = 2
    Csq = C // squeeze_rate

    U = jax.random.normal(k_x, (N, C, H, W), dtype=jnp.float32)
    # weights with shapes from Conv2d(..., kernel_size=1, bias=False)
    w1 = jax.random.normal(k_w1, (Csq, C), dtype=jnp.float32) * 0.1
    w2 = jax.random.normal(k_w2, (C, Csq), dtype=jnp.float32) * 0.1

    out = jax.block_until_ready(cse_pallas(U, w1, w2))
    ref = cse_reference(U, w1, w2)
    assert jnp.allclose(out, ref, atol=1e-5, rtol=1e-5), "fused path mismatch"

    # Case 2: force the two-pass fallback with a ragged HW (13*13 = 169, not a
    # multiple of 128) and a tiny block target so multiple tiles are used.
    N2, C2, H2, W2 = 2, 4, 13, 13
    U2 = jax.random.normal(k_x2, (N2, C2, H2, W2), dtype=jnp.float32)
    out2 = jax.block_until_ready(
        cse_pallas(U2, w1, w2,
                   fused_slab_limit_bytes=0,
                   target_block_bytes=C2 * 4 * 128))
    ref2 = cse_reference(U2, w1, w2)
    assert jnp.allclose(out2, ref2, atol=1e-5, rtol=1e-5), "fallback path mismatch"

    print("KERNEL_OK")
</pallas_src>

<mosaic_0001>
module attributes {stable_mosaic.version = 11 : i64} {
  func.func @_cse_fused_kernel(%arg0: i32, %arg1: memref<1x4x256xf32, #tpu.memory_space<vmem>>, %arg2: memref<4x2xf32, #tpu.memory_space<vmem>>, %arg3: memref<4x2xf32, #tpu.memory_space<vmem>>, %arg4: memref<1x4x256xf32, #tpu.memory_space<vmem>>) attributes {dimension_semantics = [#tpu.dimension_semantics<parallel>], iteration_bounds = array<i64: 2>, scalar_prefetch = 0 : i64, scratch_operands = 0 : i64, tpu.core_type = #tpu.core_type<tc>, window_params = [{transform_indices = @transform_0, window_bounds = array<i64: 1, 4, 256>}, {pipeline_mode = #tpu.pipeline_mode<synchronous>, transform_indices = @transform_1, window_bounds = array<i64: 4, 2>}, {pipeline_mode = #tpu.pipeline_mode<synchronous>, transform_indices = @transform_2, window_bounds = array<i64: 4, 2>}, {transform_indices = @transform_3, window_bounds = array<i64: 1, 4, 256>}]} {
    %c0 = arith.constant 0 : index
    %c0_0 = arith.constant 0 : index
    %c0_1 = arith.constant 0 : index
    %0 = vector.load %arg1[%c0, %c0_0, %c0_1] : memref<1x4x256xf32, #tpu.memory_space<vmem>>, vector<1x4x256xf32>
    %1 = vector.shape_cast %0 : vector<1x4x256xf32> to vector<4x256xf32>
    %cst = arith.constant dense<0.000000e+00> : vector<4xf32>
    %2 = vector.multi_reduction <add>, %1, %cst [1] : vector<4x256xf32> to vector<4xf32>
    %3 = vector.shape_cast %2 : vector<4xf32> to vector<4x1xf32>
    %cst_2 = arith.constant 3.906250e-03 : f32
    %4 = vector.broadcast %cst_2 : f32 to vector<4x1xf32>
    %5 = arith.mulf %3, %4 : vector<4x1xf32>
    %c0_3 = arith.constant 0 : index
    %c0_4 = arith.constant 0 : index
    %6 = vector.load %arg2[%c0_3, %c0_4] : memref<4x2xf32, #tpu.memory_space<vmem>>, vector<4x2xf32>
    %c0_5 = arith.constant 0 : index
    %c0_6 = arith.constant 0 : index
    %7 = vector.load %arg3[%c0_5, %c0_6] : memref<4x2xf32, #tpu.memory_space<vmem>>, vector<4x2xf32>
    %8 = vector.broadcast %5 : vector<4x1xf32> to vector<4x2xf32>
    %9 = arith.mulf %6, %8 : vector<4x2xf32>
    %cst_7 = arith.constant dense<0.000000e+00> : vector<2xf32>
    %10 = vector.multi_reduction <add>, %9, %cst_7 [0] : vector<4x2xf32> to vector<2xf32>
    %11 = vector.shape_cast %10 : vector<2xf32> to vector<1x2xf32>
    %12 = vector.broadcast %11 : vector<1x2xf32> to vector<4x2xf32>
    %13 = arith.mulf %7, %12 : vector<4x2xf32>
    %cst_8 = arith.constant dense<0.000000e+00> : vector<4xf32>
    %14 = vector.multi_reduction <add>, %13, %cst_8 [1] : vector<4x2xf32> to vector<4xf32>
    %15 = vector.shape_cast %14 : vector<4xf32> to vector<4x1xf32>
    %16 = arith.negf %15 : vector<4x1xf32>
    %17 = math.exp %16 : vector<4x1xf32>
    %cst_9 = arith.constant 1.000000e+00 : f32
    %18 = vector.broadcast %cst_9 : f32 to vector<4x1xf32>
    %19 = arith.addf %18, %17 : vector<4x1xf32>
    %20 = arith.divf %18, %19 : vector<4x1xf32>
    %21 = vector.broadcast %20 : vector<4x1xf32> to vector<4x256xf32>
    %22 = arith.mulf %1, %21 : vector<4x256xf32>
    %c0_10 = arith.constant 0 : index
    %c0_11 = arith.constant 0 : index
    %c0_12 = arith.constant 0 : index
    %23 = vector.load %arg4[%c0_10, %c0_11, %c0_12] : memref<1x4x256xf32, #tpu.memory_space<vmem>>, vector<1x4x256xf32>
    %24 = vector.shape_cast %23 : vector<1x4x256xf32> to vector<4x256xf32>
    %25 = vector.shape_cast %22 : vector<4x256xf32> to vector<1x4x256xf32>
    tpu.vector_store %arg4[%c0_10, %c0_11, %c0_12], %25 {strides = array<i32>} : memref<1x4x256xf32, #tpu.memory_space<vmem>>, vector<1x4x256xf32>,
    return
  }
  func.func @transform_0(%arg0: i32) -> (i32, i32, i32) {
    %c0_i32 = arith.constant 0 : i32
    %c0_i32_0 = arith.constant 0 : i32
    %c0_i32_1 = arith.constant 0 : i32
    return %arg0, %c0_i32, %c0_i32_0 : i32, i32, i32
  }
  func.func @transform_1(%arg0: i32) -> (i32, i32) {
    %c0_i32 = arith.constant 0 : i32
    %c0_i32_0 = arith.constant 0 : i32
    %c0_i32_1 = arith.constant 0 : i32
    return %c0_i32, %c0_i32_0 : i32, i32
  }
  func.func @transform_2(%arg0: i32) -> (i32, i32) {
    %c0_i32 = arith.constant 0 : i32
    %c0_i32_0 = arith.constant 0 : i32
    %c0_i32_1 = arith.constant 0 : i32
    return %c0_i32, %c0_i32_0 : i32, i32
  }
  func.func @transform_3(%arg0: i32) -> (i32, i32, i32) {
    %c0_i32 = arith.constant 0 : i32
    %c0_i32_0 = arith.constant 0 : i32
    %c0_i32_1 = arith.constant 0 : i32
    return %arg0, %c0_i32, %c0_i32_0 : i32, i32, i32
  }
}

</mosaic_0001>

<llo_original>
// kernel: tpu_custom_call.1
$region0: #{tpu_custom_call.1}
  #allocation0 [shape = 'u32[]', space=smem, size = 0x4, offset = 0x4, fixed_abs, tag = 'smem constant byte address 0x4 - core index']
  #allocation1 [shape = 'u32[144,128]{1,0:T(1,128)}', space=vmem, size = 0x12000, scoped, tag = 'internal scratch']
  %s0 = inlined_call_operand.hbm [shape: f32[2,4,256], index: 0, kind: input, shape index: {}]
  %s1 = inlined_call_operand.vmem [shape: f32[4,2], index: 1, kind: input, shape index: {}]
  %s2 = inlined_call_operand.vmem [shape: f32[4,2], index: 2, kind: input, shape index: {}]
  %s3 = inlined_call_operand.hbm [shape: f32[2,4,256], index: 3, kind: output, shape index: {}]
  %s4 = sld [smem:[#allocation0]]
  $region49: #{tpu_custom_call.1} parent=0
    _
  %s6 = ssub.s32 1, %s4
  %s7 = scalar_select 0, %s6, %s4
  $region1: #{tpu_custom_call.1} parent=0
    #allocation2 [shape = 'u8[8192]{0}', space=vmem, size = 0x2000, scoped, tag = 'input window, operand 0']
    #allocation3 [shape = 's32[2]{0}', space=sflag, size = 0x8, scoped, tag = 'scoped memory for tpu_custom_call.1']
    #allocation4 [shape = 's32[2]{0}', space=sflag, size = 0x8, scoped, tag = 'scoped memory for tpu_custom_call.1']
    #allocation5 [shape = 'u8[8192]{0}', space=vmem, size = 0x2000, scoped, tag = 'output window, operand 0']
    %8 = vsyncpa [#allocation3], 0
    %s9 = scalar_lea.sflag [#allocation3], 1
    %10 = vsyncpa %s9, 0
    %11 = vsyncpa [#allocation4], 0
    %s12 = scalar_lea.sflag [#allocation4], 1
    %13 = vsyncpa %s12, 0
    loop: start=0, step=1, limit=4
    $region2: #{tpu_custom_call.1} parent=1 // loop_pre_header
      _
    $region3: #{tpu_custom_call.1} parent=1 // loop_header
      %s15 = sphi 0, %s19
      %p16 = scmp.ge.s32.totalorder %s15, 4
      %s25 = sphi 0, %s27
      %s28 = sphi 0, %s25
      %s29 = sphi 0, %s28
      %s45 = sphi 0, %s29
      %s49 = sphi 0, %s49
      %s51 = sphi 0, %s49
      %s52 = sphi 0, %s51
      %s66 = sphi 0, %s52
      %s70 = sphi 0, %s70
      %s72 = sphi 0, %s70
      %s73 = sphi 0, %s72
      %s87 = sphi 0, %s73
      %s93 = sphi 0, %s95
      %s96 = sphi 0, %s93
      %s97 = sphi 0, %s96
      %s113 = sphi 0, %s97
    $region4: #{tpu_custom_call.1} parent=1 // loop_header_branch
      %18 = sbr.rel (%p16) target = $region8
    $region5: #{tpu_custom_call.1} parent=1 // loop_body
      %s20 = ssub.s32 %s15, 1
      %s21 = ssub.s32 %s15, 2
      %s22 = sadd.s32 %s15, 1
      %s23 = ssub.s32 %s15, %s22
      %p24 = scmp.eq.s32.totalorder %s23, 0
      %s26 = sadd.s32 %s25, 1
      %s27 = scalar_select %p24, %s25, %s26
      %p30 = pneg %p24
      %p31 = scmp.eq.s32.totalorder %s15, 1
      %p32 = por %p30, %p31
      %p33 = scmp.ne.s32.totalorder %s25, %s28
      %p34 = scmp.eq.s32.totalorder %s15, 0
      %p35 = por %p33, %p34
      %p36 = scmp.ne.s32.totalorder %s25, %s28
      %p37 = scmp.eq.s32.totalorder %s20, 1
      %p38 = por %p36, %p37
      %p39 = scmp.ne.s32.totalorder %s28, %s29
      %p40 = scmp.eq.s32.totalorder %s20, 0
      %p41 = por %p39, %p40
      %p42 = scmp.ne.s32.totalorder %s28, %s29
      %p43 = scmp.eq.s32.totalorder %s21, 1
      %p44 = por %p42, %p43
      %p46 = scmp.ne.s32.totalorder %s29, %s45
      %p47 = scmp.eq.s32.totalorder %s21, 0
      %p48 = por %p46, %p47
      %s50 = sadd.s32 %s49, 1
      %p53 = scmp.eq.s32.totalorder %s15, 1
      %p54 = scmp.ne.s32.totalorder %s49, %s51
      %p55 = scmp.eq.s32.totalorder %s15, 0
      %p56 = por %p54, %p55
      %p57 = scmp.ne.s32.totalorder %s49, %s51
      %p58 = scmp.eq.s32.totalorder %s20, 1
      %p59 = por %p57, %p58
      %p60 = scmp.ne.s32.totalorder %s51, %s52
      %p61 = scmp.eq.s32.totalorder %s20, 0
      %p62 = por %p60, %p61
      %p63 = scmp.ne.s32.totalorder %s51, %s52
      %p64 = scmp.eq.s32.totalorder %s21, 1
      %p65 = por %p63, %p64
      %p67 = scmp.ne.s32.totalorder %s52, %s66
      %p68 = scmp.eq.s32.totalorder %s21, 0
      %p69 = por %p67, %p68
      %s71 = sadd.s32 %s70, 1
      %p74 = scmp.eq.s32.totalorder %s15, 1
      %p75 = scmp.ne.s32.totalorder %s70, %s72
      %p76 = scmp.eq.s32.totalorder %s15, 0
      %p77 = por %p75, %p76
      %p78 = scmp.ne.s32.totalorder %s70, %s72
      %p79 = scmp.eq.s32.totalorder %s20, 1
      %p80 = por %p78, %p79
      %p81 = scmp.ne.s32.totalorder %s72, %s73
      %p82 = scmp.eq.s32.totalorder %s20, 0
      %p83 = por %p81, %p82
      %p84 = scmp.ne.s32.totalorder %s72, %s73
      %p85 = scmp.eq.s32.totalorder %s21, 1
      %p86 = por %p84, %p85
      %p88 = scmp.ne.s32.totalorder %s73, %s87
      %p89 = scmp.eq.s32.totalorder %s21, 0
      %p90 = por %p88, %p89
      %s91 = ssub.s32 %s15, %s22
      %p92 = scmp.eq.s32.totalorder %s91, 0
      %s94 = sadd.s32 %s93, 1
      %s95 = scalar_select %p92, %s93, %s94
      %p98 = pneg %p92
      %p99 = scmp.eq.s32.totalorder %s15, 1
      %p100 = por %p98, %p99
      %p101 = scmp.ne.s32.totalorder %s93, %s96
      %p102 = scmp.eq.s32.totalorder %s15, 0
      %p103 = por %p101, %p102
      %p104 = scmp.ne.s32.totalorder %s93, %s96
      %p105 = scmp.eq.s32.totalorder %s20, 1
      %p106 = por %p104, %p105
      %p107 = scmp.ne.s32.totalorder %s96, %s97
      %p108 = scmp.eq.s32.totalorder %s20, 0
      %p109 = por %p107, %p108
      %p110 = scmp.ne.s32.totalorder %s96, %s97
      %p111 = scmp.eq.s32.totalorder %s21, 1
      %p112 = por %p110, %p111
      %p114 = scmp.ne.s32.totalorder %s97, %s113
      %p115 = scmp.eq.s32.totalorder %s21, 0
      %p116 = por %p114, %p115
      %p117 = scmp.le.s32.totalorder 1, %s15
      %p118 = scmp.lt.s32.totalorder %s15, 3
      %p119 = pnand %p117, %p118
      %p120 = pneg %p119
      // Predicated region
      $region9: #{tpu_custom_call.1} parent=5 // pred_check
        _
      $region10: #{tpu_custom_call.1} parent=5 // pred_check_branch
        %122 = sbr.rel (%p119) target = $region12
      $region11: #{tpu_custom_call.1} parent=5 // pred_region
        %s123 = ssub.s32 %s15, 1
        // Predicated region
        $region13: #{tpu_custom_call.1} parent=11 // pred_check
          %p124 = pneg %p62
        $region14: #{tpu_custom_call.1} parent=11 // pred_check_branch
          %126 = sbr.rel (%p124) target = $region16
        $region15: #{tpu_custom_call.1} parent=11 // pred_region
          _
        $region16: #{tpu_custom_call.1} parent=11 // pred_fallthru
          _
        // Predicated region
        $region17: #{tpu_custom_call.1} parent=11 // pred_check
          %p127 = pneg %p83
        $region18: #{tpu_custom_call.1} parent=11 // pred_check_branch
          %129 = sbr.rel (%p127) target = $region20
        $region19: #{tpu_custom_call.1} parent=11 // pred_region
          _
        $region20: #{tpu_custom_call.1} parent=11 // pred_fallthru
          _
      $region12: #{tpu_custom_call.1} parent=5 // pred_fallthru
        _
      %p130 = scmp.lt.s32.totalorder %s15, 2
      // Predicated region
      $region21: #{tpu_custom_call.1} parent=5 // pred_check
        %p131 = pneg %p130
      $region22: #{tpu_custom_call.1} parent=5 // pred_check_branch
        %133 = sbr.rel (%p131) target = $region24
      $region23: #{tpu_custom_call.1} parent=5 // pred_region
        // Predicated region
        $region25: #{tpu_custom_call.1} parent=23 // pred_check
          %p134 = pneg %p35
        $region26: #{tpu_custom_call.1} parent=23 // pred_check_branch
          %136 = sbr.rel (%p134) target = $region28
        $region27: #{tpu_custom_call.1} parent=23 // pred_region
          %s137 = sand.u32 %s25, 1
          %s138 = scalar_lea.sflag [#allocation3], %s137
          %s139 = sand.u32 %s25, 1
          %s140 = smul.addr %s139, 8
          %s141 = scalar_lea.vmem [#allocation2], %s140
          %s143 = ssub.s32 128, 128
          %144 = vsyncadd %s138, %s143
          %s145 = smul.addr %s15, 2
          %s146 = smul.addr %s145, 64
          %s147 = scalar_lea.hbm %s0, %s146
          %s149 = sshll.u32 %s141, 4
          %s150 = int_to_ptr.vmem [resolvable:$true] %s149
          %152 = dma.hbm_to_vmem [thread:$0]  %s147, 128, %s150, %s138
        $region28: #{tpu_custom_call.1} parent=23 // pred_fallthru
          _
      $region24: #{tpu_custom_call.1} parent=5 // pred_fallthru
        _
      %p153 = scmp.le.s32.totalorder 1, %s15
      %p154 = scmp.lt.s32.totalorder %s15, 3
      %p155 = pnand %p153, %p154
      %p156 = pneg %p155
      // Predicated region
      $region29: #{tpu_custom_call.1} parent=5 // pred_check
        _
      $region30: #{tpu_custom_call.1} parent=5 // pred_check_branch
        %158 = sbr.rel (%p155) target = $region32
      $region31: #{tpu_custom_call.1} parent=5 // pred_region
        %s159 = ssub.s32 %s15, 1
        %s160 = sand.u32 %s28, 1
        %s161 = scalar_lea.sflag [#allocation3], %s160
        %s162 = sand.u32 %s28, 1
        %s163 = smul.addr %s162, 8
        %s164 = scalar_lea.vmem [#allocation2], %s163
        // Predicated region
        $region33: #{tpu_custom_call.1} parent=31 // pred_check
          %p165 = pneg %p41
        $region34: #{tpu_custom_call.1} parent=31 // pred_check_branch
          %167 = sbr.rel (%p165) target = $region36
        $region35: #{tpu_custom_call.1} parent=31 // pred_region
          %168 = dma.done %s161, 128
        $region36: #{tpu_custom_call.1} parent=31 // pred_fallthru
          _
        %s169 = sand.u32 %s28, 1
        %s170 = scalar_lea.sflag [#allocation3], %s169
        %s171 = sand.u32 %s28, 1
        %s172 = smul.addr %s171, 8
        %s173 = scalar_lea.vmem [#allocation2], %s172
        %p174 = pneg %p41
        %p175 = pneg %p38
        %p176 = pneg %p62
        %p177 = pneg %p59
        %p178 = pneg %p83
        %p179 = pneg %p80
        %p180 = pneg %p109
        %p181 = pneg %p106
        %s182 = sand.u32 %s96, 1
        %s183 = scalar_lea.sflag [#allocation4], %s182
        %s184 = sand.u32 %s96, 1
        %s185 = smul.addr %s184, 8
        %s186 = scalar_lea.vmem [#allocation5], %s185
        %v187 = vld [vmem:[%s164] sm:$0xff]
        %v189 = vcombine.high %v187, %v187
        %vm191 = vcmask 1043456
        %v192 = vsel %vm191, %v187, 0.0
        %v193 = vsel %vm191, %v189, 0.0
        %v194 = vadd.f32 %v192, %v193
        %195 = vadd.xlane.f32.xlu0 %v194
        %v196 = vpop.xlane.xlu0 %195
        %v197 = vmul.f32 %v196, 0.00390625
        %v198 = vld [vmem:[%s1] sm:$0xf]
        %v199 = vld [vmem:[%s2] sm:$0xf]
        %v200 = vmul.f32 %v198, %v197
        %vm201 = vcmask 11264
        %v202 = vsel %vm201, %v200, 0.0
        %v203 = vrot.slane %v202, 4
        %v204 = vadd.f32 %v202, %v203
        %v205 = vrot.slane %v204, 2
        %v206 = vadd.f32 %v204, %v205
        %v207 = vrot.slane %v206, 1
        %v208 = vadd.f32 %v206, %v207
        %v209 = vmul.f32 %v199, %v208
        %v210 = vsel %vm201, %v209, 0.0
        %211 = vadd.xlane.f32.xlu0 %v210
        %v212 = vpop.xlane.xlu0 %211
        %v213 = vxor.u32 %v212, 2147483648
        %v214 = vmul.f32 %v213, 1.442695
        %v215 = vpow.pop %v214
        %v216 = vadd.f32 %v215, 1.0
        %v217 = vrcp.pop %v216
        %v218 = vmul.f32 1.0, %v217
        %v221 = vunpack.c.l.s4 839922192
        %v222 = vunpack.c.0.s8 %v221
        %v223 = vlaneseq
        %v224 = vshrl.u32 %v223, 7
        %v225 = vsub.s32 %v222, %v224
        %v226 = vrot.slane %v218, %v225
        %v228 = vmul.f32 %v187, %v226
        %229 = vst [vmem:[%s186] sm:$0xff] %v228
        %s230 = sand.u32 %s96, 1
        %s231 = scalar_lea.sflag [#allocation4], %s230
        %s232 = sand.u32 %s96, 1
        %s233 = smul.addr %s232, 8
        %s234 = scalar_lea.vmem [#allocation5], %s233
        // Predicated region
        $region37: #{tpu_custom_call.1} parent=31 // pred_check
          %p235 = pneg %p106
        $region38: #{tpu_custom_call.1} parent=31 // pred_check_branch
          %237 = sbr.rel (%p235) target = $region40
        $region39: #{tpu_custom_call.1} parent=31 // pred_region
          %s239 = ssub.s32 128, 128
          %240 = vsyncadd %s231, %s239
          %s241 = smul.addr %s20, 2
          %s242 = smul.addr %s241, 64
          %s243 = scalar_lea.hbm %s3, %s242
          %s245 = sshll.u32 %s234, 4
          %s246 = int_to_ptr.vmem [resolvable:$true] %s245
          %248 = dma.vmem_to_hbm [thread:$0]  %s246, 128, %s243, %s231
        $region40: #{tpu_custom_call.1} parent=31 // pred_fallthru
          _
      $region32: #{tpu_custom_call.1} parent=5 // pred_fallthru
        _
      %p249 = scmp.le.s32.totalorder 2, %s15
      // Predicated region
      $region41: #{tpu_custom_call.1} parent=5 // pred_check
        %p250 = pneg %p249
      $region42: #{tpu_custom_call.1} parent=5 // pred_check_branch
        %252 = sbr.rel (%p250) target = $region44
      $region43: #{tpu_custom_call.1} parent=5 // pred_region
        %s253 = ssub.s32 %s15, 2
        // Predicated region
        $region45: #{tpu_custom_call.1} parent=43 // pred_check
          %p254 = pneg %p112
        $region46: #{tpu_custom_call.1} parent=43 // pred_check_branch
          %256 = sbr.rel (%p254) target = $region48
        $region47: #{tpu_custom_call.1} parent=43 // pred_region
          %s257 = sand.u32 %s97, 1
          %s258 = scalar_lea.sflag [#allocation4], %s257
          %s259 = sand.u32 %s97, 1
          %s260 = smul.addr %s259, 8
          %s261 = scalar_lea.vmem [#allocation5], %s260
          %262 = dma.done %s258, 128
        $region48: #{tpu_custom_call.1} parent=43 // pred_fallthru
          _
      $region44: #{tpu_custom_call.1} parent=5 // pred_fallthru
        _
    $region6: #{tpu_custom_call.1} parent=1 // loop_footer
      %s19 = sadd.s32 1, %s15
    $region7: #{tpu_custom_call.1} parent=1 // loop_footer_branch
      %14 = sbr.rel target = $region3
    $region8: #{tpu_custom_call.1} parent=1 // loop_exit
      _
    %263 = vsyncpa [#allocation3], 1
    %s264 = scalar_lea.sflag [#allocation3], 1
    %265 = vsyncpa %s264, 1
    %266 = vsyncpa [#allocation4], 1
    %s267 = scalar_lea.sflag [#allocation4], 1
    %268 = vsyncpa %s267, 1

</llo_original>
